<compile_context>
chip_gen: v5e
topology: v5e:2x2
jax: 0.10.0
libtpu: 0.0.40
codegen_flags: <defaults>
</compile_context>

<pallas_src>
import functools
import math

import jax
import jax.numpy as jnp
from jax.experimental import pallas as pl
from jax.experimental.pallas import tpu as pltpu

_SQRT_JITTER = math.sqrt(1e-6)


def _softplus(x):
    # numerically-stable softplus; exp/log1p go to the EUP slot
    return jnp.maximum(x, 0.0) + jnp.log1p(jnp.exp(-jnp.abs(x)))


def _gplvm_kernel(
    y_ref, eps_ref,
    w1_ref, b1_ref, w2_ref, b2_ref,                # fused encoder (W bf16, b f32)
    xtr_ts_ref, xt_sqs_ref, alpha_ref, kinv_ref,   # hoisted, pre-scaled GP consts
    scal_ref,                                      # SMEM: [-0.5/ls^2, outputscale, noise]
    out_ref,                                       # (TB, Dp): [f_mean | f_var lane | 0s]
    *, latent_dim, data_dim,
):
    Q = latent_dim
    Dp = out_ref.shape[-1]

    c = scal_ref[0]            # -0.5 / ls^2  (negative)
    outputscale = scal_ref[1]
    noise = scal_ref[2]

    # ---- Fused encoder: two bf16 MXU matmuls, f32 accumulate ---------------
    yb = y_ref[...].astype(jnp.bfloat16)                              # (TB, D)
    h = jnp.dot(yb, w1_ref[...], preferred_element_type=jnp.float32)
    h = jnp.maximum(h + b1_ref[...], 0.0)                             # (TB, 2Q) f32
    z = jnp.dot(h.astype(jnp.bfloat16), w2_ref[...],
                preferred_element_type=jnp.float32) + b2_ref[...]     # (TB, 2Q) f32
    x_mean = z[:, :Q]                                                 # (TB, Q)
    x_std = _softplus(z[:, Q:]) + jnp.float32(_SQRT_JITTER)           # (TB, Q)

    # ---- Reparameterized sample (f32 VPU) -----------------------------------
    x = x_mean + x_std * eps_ref[...]                                 # (TB, Q)

    # ---- GP decoder (RBF); -0.5/ls^2 folded into the hoisted constants -----
    x_sq = jnp.sum(x * x, axis=-1, keepdims=True)                     # (TB, 1)
    cross = jnp.dot(x.astype(jnp.bfloat16), xtr_ts_ref[...],          # x @ (Xtr^T/ls^2)
                    preferred_element_type=jnp.float32)               # (TB, N)
    arg = jnp.minimum(c * x_sq + xt_sqs_ref[...] + cross, 0.0)        # = -0.5*d^2/ls^2
    k_xs = jnp.exp(arg)                                               # (TB, N) f32
    kb = k_xs.astype(jnp.bfloat16)

    # predictive mean: k_xs @ (outputscale * alpha), alpha lane-padded to Dp
    f_mean = jnp.dot(kb, alpha_ref[...],
                     preferred_element_type=jnp.float32)              # (TB, Dp)

    # predictive variance: outputscale - k_xs (osc^2 Kinv) k_xs^T + noise
    kv = jnp.dot(kb, kinv_ref[...],
                 preferred_element_type=jnp.float32)                  # (TB, N)
    quad = jnp.sum(kv * k_xs, axis=-1, keepdims=True)                 # (TB, 1)
    f_var = jnp.maximum(outputscale - quad, 0.0) + noise              # (TB, 1)

    # single lane-dense store: f_var lives in spare lane `data_dim`
    lane = jax.lax.broadcasted_iota(jnp.int32, (1, Dp), 1)
    out_ref[...] = jnp.where(lane == data_dim, f_var, f_mean)


def _pick_batch_tile(B, block_b):
    """Batch tile that divides B (no wrapper pad) with a sublane-friendly size.

    Returns (tile, needs_pad)."""
    if B <= block_b:
        if B >= 16 and B % 16 == 0:
            return B // 2, False     # >=2 grid steps -> shard across v7x's 2 TCs
        return B, False
    top = (min(block_b, B) // 8) * 8
    for t in range(top, 7, -8):
        if B % t == 0:
            return t, False
    return max(top, 8), True         # rare fallback: pad batch up to a multiple


def gplvm_forward(y, eps, enc_params, gp_params, *, block_b=512):
    """Gridded pallas_call over the batch axis; weights/GP tensors resident."""
    B, D = y.shape
    Q = eps.shape[1]
    w1, b1, w2, b2 = enc_params
    xtr_ts, xt_sqs, alpha_p, kinv_s, scalars = gp_params
    N = xtr_ts.shape[1]
    Dp = alpha_p.shape[1]            # lane-padded output width (mult of 128, > D)

    tb, needs_pad = _pick_batch_tile(B, block_b)
    if needs_pad:
        # TODO(synk): fallback only when B has no sublane-friendly divisor;
        # costs one extra HBM pass over y/eps.
        pad = (-B) % tb
        y = jnp.pad(y, ((0, pad), (0, 0)))
        eps = jnp.pad(eps, ((0, pad), (0, 0)))
    Bp = y.shape[0]
    grid = (Bp // tb,)

    # VMEM budget: single-buffered resident constants + double-buffered streams.
    resident_bytes = sum(int(a.size) * a.dtype.itemsize
                         for a in (w1, b1, w2, b2, xtr_ts, xt_sqs, alpha_p, kinv_s))
    stream_bytes = 2 * (tb * D * 4 + tb * Q * 4 + tb * Dp * 4)
    vmem_limit = int(min(max(resident_bytes + stream_bytes + (8 << 20), 32 << 20),
                         100 << 20))

    kernel = functools.partial(_gplvm_kernel, latent_dim=Q, data_dim=D)

    def _resident(shape):
        # constant index_map -> fetched once; Buffered(1): no double-buffer waste
        return pl.BlockSpec(shape, lambda i: (0, 0), pipeline_mode=pl.Buffered(1))

    out = pl.pallas_call(
        kernel,
        out_shape=jax.ShapeDtypeStruct((Bp, Dp), jnp.float32),
        grid_spec=pltpu.PrefetchScalarGridSpec(
            num_scalar_prefetch=0,
            grid=grid,
            in_specs=[
                pl.BlockSpec((tb, D), lambda i: (i, 0)),        # y     (streamed)
                pl.BlockSpec((tb, Q), lambda i: (i, 0)),        # eps   (streamed)
                _resident((D, 2 * Q)),                          # W1 fused   (bf16)
                _resident((1, 2 * Q)),                          # b1 fused   (f32)
                _resident((2 * Q, 2 * Q)),                      # W2 blk-diag(bf16)
                _resident((1, 2 * Q)),                          # b2 fused   (f32)
                _resident((Q, N)),                              # Xtr^T/ls^2 (bf16)
                _resident((1, N)),                              # c*|Xtr|^2  (f32)
                _resident((N, Dp)),                             # osc*alpha, lane-padded (bf16)
                _resident((N, N)),                              # osc^2*Kinv (bf16)
                pl.BlockSpec(memory_space=pltpu.MemorySpace.SMEM),  # scalars
            ],
            out_specs=pl.BlockSpec((tb, Dp), lambda i: (i, 0)),
        ),
        compiler_params=pltpu.CompilerParams(
            dimension_semantics=("parallel",),
            vmem_limit_bytes=vmem_limit),
    )(y, eps, w1, b1, w2, b2, xtr_ts, xt_sqs, alpha_p, kinv_s, scalars)

    f_mean = out[:B, :D]
    f_var = jnp.broadcast_to(out[:B, D:D + 1], (B, D))
    return f_mean, f_var


def prepare_params(raw_enc, raw_gp):
    """One-time host/XLA-side fusing, pre-scaling and dtype casts."""
    (w1m, b1m, w2m, b2m, w1s, b1s, w2s, b2s) = raw_enc
    (xtr, alpha, kinv, ls, osc, noise) = raw_gp
    Q = xtr.shape[1]
    D = alpha.shape[1]

    # fused encoder: [mean || std] first layer + block-diagonal second layer
    w1 = jnp.concatenate([w1m, w1s], axis=1).astype(jnp.bfloat16)        # (D, 2Q)
    b1 = jnp.concatenate([b1m, b1s], axis=1).astype(jnp.float32)         # (1, 2Q)
    w2 = jnp.zeros((2 * Q, 2 * Q), jnp.float32)
    w2 = w2.at[:Q, :Q].set(w2m).at[Q:, Q:].set(w2s).astype(jnp.bfloat16)  # (2Q, 2Q)
    b2 = jnp.concatenate([b2m, b2s], axis=1).astype(jnp.float32)         # (1, 2Q)

    # hoisted / pre-folded GP constants
    c = -0.5 / (ls * ls)                                      # negative
    xtr_ts = ((-2.0 * c) * xtr.T).astype(jnp.bfloat16)        # (Q, N) = Xtr^T / ls^2
    xt_sqs = (c * jnp.sum(xtr * xtr, -1)).reshape(1, -1).astype(jnp.float32)  # (1, N)
    Dp = pl.cdiv(D + 1, 128) * 128                            # lane-dense + spare fvar lane
    alpha_p = jnp.zeros((alpha.shape[0], Dp), jnp.float32).at[:, :D].set(osc * alpha)
    alpha_p = alpha_p.astype(jnp.bfloat16)                    # (N, Dp)
    kinv_s = ((osc * osc) * kinv).astype(jnp.bfloat16)        # (N, N)
    scalars = jnp.array([c, osc, noise], jnp.float32)
    return (w1, b1, w2, b2), (xtr_ts, xt_sqs, alpha_p, kinv_s, scalars)


def _init_linear(key, fan_in, fan_out):
    # torch.nn.Linear default init: U(-1/sqrt(fan_in), 1/sqrt(fan_in))
    k1, k2 = jax.random.split(key)
    bound = 1.0 / math.sqrt(fan_in)
    w = jax.random.uniform(k1, (fan_in, fan_out), jnp.float32, -bound, bound)
    b = jax.random.uniform(k2, (1, fan_out), jnp.float32, -bound, bound)
    return w, b


def _reference(y, eps, raw_enc, raw_gp):
    """Pure-JAX GPLVM forward (unfused, f32), for correctness checking."""
    (w1m, b1m, w2m, b2m, w1s, b1s, w2s, b2s) = raw_enc
    (xtr, alpha, kinv, ls, osc, noise) = raw_gp
    x_mean = jnp.maximum(y @ w1m + b1m, 0.0) @ w2m + b2m
    s_raw = jnp.maximum(y @ w1s + b1s, 0.0) @ w2s + b2s
    x_std = jax.nn.softplus(s_raw) + _SQRT_JITTER
    x = x_mean + x_std * eps
    sq = (jnp.sum(x * x, -1, keepdims=True)
          + jnp.sum(xtr * xtr, -1)[None, :] - 2.0 * (x @ xtr.T))
    k_xs = osc * jnp.exp(-0.5 * sq / (ls * ls))
    f_mean = k_xs @ alpha
    quad = jnp.sum((k_xs @ kinv) * k_xs, -1, keepdims=True)
    f_var = jnp.maximum(osc - quad, 0.0) + noise
    return f_mean, jnp.broadcast_to(f_var, f_mean.shape)


if __name__ == "__main__":
    # small shapes consistent with the module: y ~ B x D, latent Q
    B, D, Q, N = 8, 32, 4, 16   # batch, data_dim, latent_dim, GP train points

    key = jax.random.PRNGKey(0)
    keys = jax.random.split(key, 12)

    # observed data + reparameterization noise (torch.randn equivalent)
    y = jax.random.normal(keys[0], (B, D), jnp.float32)
    eps = jax.random.normal(keys[1], (B, Q), jnp.float32)

    # Encoder: mean_nn = MLP(D -> Q -> Q), std_nn = MLP(D -> Q -> Q)
    w1m, b1m = _init_linear(keys[2], D, Q)
    w2m, b2m = _init_linear(keys[3], Q, Q)
    w1s, b1s = _init_linear(keys[4], D, Q)
    w2s, b2s = _init_linear(keys[5], Q, Q)
    raw_enc = (w1m, b1m, w2m, b2m, w1s, b1s, w2s, b2s)

    # GP decoder: synthetic deterministic training set + hyperparameters
    lengthscale = jnp.float32(1.0)
    outputscale = jnp.float32(1.0)
    noise = jnp.float32(0.01)

    xtr = jax.random.normal(keys[6], (N, Q), jnp.float32)
    ytr = jax.random.normal(keys[7], (N, D), jnp.float32)

    # one-time setup in plain JAX: (K + noise I)^-1 and alpha
    # TODO(synk): a Cholesky solve would be numerically preferable for large N.
    sq = (jnp.sum(xtr * xtr, -1, keepdims=True)
          + jnp.sum(xtr * xtr, -1)[None, :] - 2.0 * (xtr @ xtr.T))
    k_tt = outputscale * jnp.exp(-0.5 * sq / (lengthscale * lengthscale))
    k_tt = k_tt + noise * jnp.eye(N, dtype=jnp.float32)
    kinv = jnp.linalg.inv(k_tt)
    alpha = kinv @ ytr
    raw_gp = (xtr, alpha, kinv, lengthscale, outputscale, noise)

    enc_params, gp_params = prepare_params(raw_enc, raw_gp)

    f_mean, f_var = gplvm_forward(y, eps, enc_params, gp_params)
    jax.block_until_ready((f_mean, f_var))

    # correctness vs. unfused pure-JAX f32 reference
    ref_mean, ref_var = _reference(y, eps, raw_enc, raw_gp)

    assert f_mean.shape == (B, D) and f_var.shape == (B, D)
    assert bool(jnp.all(jnp.isfinite(f_mean))) and bool(jnp.all(f_var > 0))
    assert bool(jnp.allclose(f_mean, ref_mean, atol=5e-2, rtol=5e-2))
    assert bool(jnp.allclose(f_var, ref_var, atol=5e-2, rtol=5e-2))
    print("KERNEL_OK")
</pallas_src>

<mosaic_0001>
module attributes {stable_mosaic.version = 11 : i64} {
  func.func @_gplvm_kernel(%arg0: i32, %arg1: memref<8x32xf32, #tpu.memory_space<vmem>>, %arg2: memref<8x4xf32, #tpu.memory_space<vmem>>, %arg3: memref<32x8xbf16, #tpu.memory_space<vmem>>, %arg4: memref<1x8xf32, #tpu.memory_space<vmem>>, %arg5: memref<8x8xbf16, #tpu.memory_space<vmem>>, %arg6: memref<1x8xf32, #tpu.memory_space<vmem>>, %arg7: memref<4x16xbf16, #tpu.memory_space<vmem>>, %arg8: memref<1x16xf32, #tpu.memory_space<vmem>>, %arg9: memref<16x128xbf16, #tpu.memory_space<vmem>>, %arg10: memref<16x16xbf16, #tpu.memory_space<vmem>>, %arg11: memref<3xf32, #tpu.memory_space<smem>>, %arg12: memref<8x128xf32, #tpu.memory_space<vmem>>) attributes {dimension_semantics = [#tpu.dimension_semantics<parallel>], iteration_bounds = array<i64: 1>, scalar_prefetch = 0 : i64, scratch_operands = 0 : i64, tpu.core_type = #tpu.core_type<tc>, window_params = [{transform_indices = @transform_0, window_bounds = array<i64: 8, 32>}, {transform_indices = @transform_1, window_bounds = array<i64: 8, 4>}, {pipeline_mode = #tpu.pipeline_mode<synchronous>, transform_indices = @transform_2, window_bounds = array<i64: 32, 8>}, {pipeline_mode = #tpu.pipeline_mode<synchronous>, transform_indices = @transform_3, window_bounds = array<i64: 1, 8>}, {pipeline_mode = #tpu.pipeline_mode<synchronous>, transform_indices = @transform_4, window_bounds = array<i64: 8, 8>}, {pipeline_mode = #tpu.pipeline_mode<synchronous>, transform_indices = @transform_5, window_bounds = array<i64: 1, 8>}, {pipeline_mode = #tpu.pipeline_mode<synchronous>, transform_indices = @transform_6, window_bounds = array<i64: 4, 16>}, {pipeline_mode = #tpu.pipeline_mode<synchronous>, transform_indices = @transform_7, window_bounds = array<i64: 1, 16>}, {pipeline_mode = #tpu.pipeline_mode<synchronous>, transform_indices = @transform_8, window_bounds = array<i64: 16, 128>}, {pipeline_mode = #tpu.pipeline_mode<synchronous>, transform_indices = @transform_9, window_bounds = array<i64: 16, 16>}, {transform_indices = @transform_10, window_bounds = array<i64: 3>}, {transform_indices = @transform_11, window_bounds = array<i64: 8, 128>}]} {
    %c0 = arith.constant 0 : index
    %0 = memref.load %arg11[%c0] : memref<3xf32, #tpu.memory_space<smem>>
    %c1 = arith.constant 1 : index
    %1 = memref.load %arg11[%c1] : memref<3xf32, #tpu.memory_space<smem>>
    %c2 = arith.constant 2 : index
    %2 = memref.load %arg11[%c2] : memref<3xf32, #tpu.memory_space<smem>>
    %c0_0 = arith.constant 0 : index
    %c0_1 = arith.constant 0 : index
    %3 = vector.load %arg1[%c0_0, %c0_1] : memref<8x32xf32, #tpu.memory_space<vmem>>, vector<8x32xf32>
    %4 = arith.truncf %3 : vector<8x32xf32> to vector<8x32xbf16>
    %c0_2 = arith.constant 0 : index
    %c0_3 = arith.constant 0 : index
    %5 = vector.load %arg3[%c0_2, %c0_3] : memref<32x8xbf16, #tpu.memory_space<vmem>>, vector<32x8xbf16>
    %cst = arith.constant dense<0.000000e+00> : vector<8x8xf32>
    %6 = tpu.matmul %4, %5, %cst {dimension_numbers = #tpu.dot_dimension_numbers<[1], [0], [0], [1], [0, 0, 1, 1], [], []>} : vector<8x32xbf16>, vector<32x8xbf16>, vector<8x8xf32> -> vector<8x8xf32>
    %c0_4 = arith.constant 0 : index
    %c0_5 = arith.constant 0 : index
    %7 = vector.load %arg4[%c0_4, %c0_5] : memref<1x8xf32, #tpu.memory_space<vmem>>, vector<1x8xf32>
    %8 = vector.broadcast %7 : vector<1x8xf32> to vector<8x8xf32>
    %9 = arith.addf %6, %8 : vector<8x8xf32>
    %cst_6 = arith.constant 0.000000e+00 : f32
    %10 = vector.broadcast %cst_6 : f32 to vector<8x8xf32>
    %11 = arith.maximumf %9, %10 : vector<8x8xf32>
    %12 = arith.truncf %11 : vector<8x8xf32> to vector<8x8xbf16>
    %c0_7 = arith.constant 0 : index
    %c0_8 = arith.constant 0 : index
    %13 = vector.load %arg5[%c0_7, %c0_8] : memref<8x8xbf16, #tpu.memory_space<vmem>>, vector<8x8xbf16>
    %cst_9 = arith.constant dense<0.000000e+00> : vector<8x8xf32>
    %14 = tpu.matmul %12, %13, %cst_9 {dimension_numbers = #tpu.dot_dimension_numbers<[1], [0], [0], [1], [0, 0, 1, 1], [], []>} : vector<8x8xbf16>, vector<8x8xbf16>, vector<8x8xf32> -> vector<8x8xf32>
    %c0_10 = arith.constant 0 : index
    %c0_11 = arith.constant 0 : index
    %15 = vector.load %arg6[%c0_10, %c0_11] : memref<1x8xf32, #tpu.memory_space<vmem>>, vector<1x8xf32>
    %16 = vector.broadcast %15 : vector<1x8xf32> to vector<8x8xf32>
    %17 = arith.addf %14, %16 : vector<8x8xf32>
    %18 = vector.extract_strided_slice %17 {offsets = [0, 0], sizes = [8, 4], strides = [1, 1]} : vector<8x8xf32> to vector<8x4xf32>
    %19 = vector.extract_strided_slice %17 {offsets = [0, 4], sizes = [8, 4], strides = [1, 1]} : vector<8x8xf32> to vector<8x4xf32>
    %cst_12 = arith.constant 0.000000e+00 : f32
    %20 = vector.broadcast %cst_12 : f32 to vector<8x4xf32>
    %21 = arith.maximumf %19, %20 : vector<8x4xf32>
    %22 = math.absf %19 : vector<8x4xf32>
    %cst_13 = arith.constant 0.000000e+00 : f32
    %23 = vector.broadcast %cst_13 : f32 to vector<8x4xf32>
    %24 = arith.subf %23, %22 : vector<8x4xf32>
    %25 = math.exp %24 : vector<8x4xf32>
    %26 = math.log1p %25 : vector<8x4xf32>
    %27 = arith.addf %21, %26 : vector<8x4xf32>
    %cst_14 = arith.constant 1.000000e-03 : f32
    %28 = vector.broadcast %cst_14 : f32 to vector<8x4xf32>
    %29 = arith.addf %27, %28 : vector<8x4xf32>
    %c0_15 = arith.constant 0 : index
    %c0_16 = arith.constant 0 : index
    %30 = vector.load %arg2[%c0_15, %c0_16] : memref<8x4xf32, #tpu.memory_space<vmem>>, vector<8x4xf32>
    %31 = arith.mulf %29, %30 : vector<8x4xf32>
    %32 = arith.addf %18, %31 : vector<8x4xf32>
    %33 = arith.mulf %32, %32 : vector<8x4xf32>
    %cst_17 = arith.constant dense<0.000000e+00> : vector<8xf32>
    %34 = vector.multi_reduction <add>, %33, %cst_17 [1] : vector<8x4xf32> to vector<8xf32>
    %35 = vector.shape_cast %34 : vector<8xf32> to vector<8x1xf32>
    %36 = arith.truncf %32 : vector<8x4xf32> to vector<8x4xbf16>
    %c0_18 = arith.constant 0 : index
    %c0_19 = arith.constant 0 : index
    %37 = vector.load %arg7[%c0_18, %c0_19] : memref<4x16xbf16, #tpu.memory_space<vmem>>, vector<4x16xbf16>
    %cst_20 = arith.constant dense<0.000000e+00> : vector<8x16xf32>
    %38 = tpu.matmul %36, %37, %cst_20 {dimension_numbers = #tpu.dot_dimension_numbers<[1], [0], [0], [1], [0, 0, 1, 1], [], []>} : vector<8x4xbf16>, vector<4x16xbf16>, vector<8x16xf32> -> vector<8x16xf32>
    %39 = vector.broadcast %0 : f32 to vector<8x1xf32>
    %40 = arith.mulf %39, %35 : vector<8x1xf32>
    %c0_21 = arith.constant 0 : index
    %c0_22 = arith.constant 0 : index
    %41 = vector.load %arg8[%c0_21, %c0_22] : memref<1x16xf32, #tpu.memory_space<vmem>>, vector<1x16xf32>
    %42 = vector.broadcast %40 : vector<8x1xf32> to vector<8x16xf32>
    %43 = vector.broadcast %41 : vector<1x16xf32> to vector<8x16xf32>
    %44 = arith.addf %42, %43 : vector<8x16xf32>
    %45 = arith.addf %44, %38 : vector<8x16xf32>
    %cst_23 = arith.constant 0.000000e+00 : f32
    %46 = vector.broadcast %cst_23 : f32 to vector<8x16xf32>
    %47 = arith.minimumf %45, %46 : vector<8x16xf32>
    %48 = math.exp %47 : vector<8x16xf32>
    %49 = arith.truncf %48 : vector<8x16xf32> to vector<8x16xbf16>
    %c0_24 = arith.constant 0 : index
    %c0_25 = arith.constant 0 : index
    %50 = vector.load %arg9[%c0_24, %c0_25] : memref<16x128xbf16, #tpu.memory_space<vmem>>, vector<16x128xbf16>
    %cst_26 = arith.constant dense<0.000000e+00> : vector<8x128xf32>
    %51 = tpu.matmul %49, %50, %cst_26 {dimension_numbers = #tpu.dot_dimension_numbers<[1], [0], [0], [1], [0, 0, 1, 1], [], []>} : vector<8x16xbf16>, vector<16x128xbf16>, vector<8x128xf32> -> vector<8x128xf32>
    %c0_27 = arith.constant 0 : index
    %c0_28 = arith.constant 0 : index
    %52 = vector.load %arg10[%c0_27, %c0_28] : memref<16x16xbf16, #tpu.memory_space<vmem>>, vector<16x16xbf16>
    %cst_29 = arith.constant dense<0.000000e+00> : vector<8x16xf32>
    %53 = tpu.matmul %49, %52, %cst_29 {dimension_numbers = #tpu.dot_dimension_numbers<[1], [0], [0], [1], [0, 0, 1, 1], [], []>} : vector<8x16xbf16>, vector<16x16xbf16>, vector<8x16xf32> -> vector<8x16xf32>
    %54 = arith.mulf %53, %48 : vector<8x16xf32>
    %cst_30 = arith.constant dense<0.000000e+00> : vector<8xf32>
    %55 = vector.multi_reduction <add>, %54, %cst_30 [1] : vector<8x16xf32> to vector<8xf32>
    %56 = vector.shape_cast %55 : vector<8xf32> to vector<8x1xf32>
    %57 = vector.broadcast %1 : f32 to vector<8x1xf32>
    %58 = arith.subf %57, %56 : vector<8x1xf32>
    %cst_31 = arith.constant 0.000000e+00 : f32
    %59 = vector.broadcast %cst_31 : f32 to vector<8x1xf32>
    %60 = arith.maximumf %58, %59 : vector<8x1xf32>
    %61 = vector.broadcast %2 : f32 to vector<8x1xf32>
    %62 = arith.addf %60, %61 : vector<8x1xf32>
    %63 = tpu.iota {dimensions = array<i32: 1>} : vector<1x128xi32>
    %c32_i32 = arith.constant 32 : i32
    %64 = vector.broadcast %c32_i32 : i32 to vector<1x128xi32>
    %65 = arith.cmpi eq, %63, %64 : vector<1x128xi32>
    %66 = vector.shape_cast %65 : vector<1x128xi1> to vector<1x128xi1>
    %67 = vector.broadcast %66 : vector<1x128xi1> to vector<8x128xi1>
    %68 = vector.shape_cast %62 : vector<8x1xf32> to vector<8x1xf32>
    %69 = vector.broadcast %68 : vector<8x1xf32> to vector<8x128xf32>
    %70 = arith.select %67, %69, %51 : vector<8x128xi1>, vector<8x128xf32>
    %c0_32 = arith.constant 0 : index
    %c0_33 = arith.constant 0 : index
    %71 = vector.load %arg12[%c0_32, %c0_33] : memref<8x128xf32, #tpu.memory_space<vmem>>, vector<8x128xf32>
    tpu.vector_store %arg12[%c0_32, %c0_33], %70 {strides = array<i32>} : memref<8x128xf32, #tpu.memory_space<vmem>>, vector<8x128xf32>,
    return
  }
  func.func @transform_0(%arg0: i32) -> (i32, i32) {
    %c0_i32 = arith.constant 0 : i32
    %c0_i32_0 = arith.constant 0 : i32
    return %arg0, %c0_i32 : i32, i32
  }
  func.func @transform_1(%arg0: i32) -> (i32, i32) {
    %c0_i32 = arith.constant 0 : i32
    %c0_i32_0 = arith.constant 0 : i32
    return %arg0, %c0_i32 : i32, i32
  }
  func.func @transform_2(%arg0: i32) -> (i32, i32) {
    %c0_i32 = arith.constant 0 : i32
    %c0_i32_0 = arith.constant 0 : i32
    %c0_i32_1 = arith.constant 0 : i32
    return %c0_i32, %c0_i32_0 : i32, i32
  }
  func.func @transform_3(%arg0: i32) -> (i32, i32) {
    %c0_i32 = arith.constant 0 : i32
    %c0_i32_0 = arith.constant 0 : i32
    %c0_i32_1 = arith.constant 0 : i32
    return %c0_i32, %c0_i32_0 : i32, i32
  }
  func.func @transform_4(%arg0: i32) -> (i32, i32) {
    %c0_i32 = arith.constant 0 : i32
    %c0_i32_0 = arith.constant 0 : i32
    %c0_i32_1 = arith.constant 0 : i32
    return %c0_i32, %c0_i32_0 : i32, i32
  }
  func.func @transform_5(%arg0: i32) -> (i32, i32) {
    %c0_i32 = arith.constant 0 : i32
    %c0_i32_0 = arith.constant 0 : i32
    %c0_i32_1 = arith.constant 0 : i32
    return %c0_i32, %c0_i32_0 : i32, i32
  }
  func.func @transform_6(%arg0: i32) -> (i32, i32) {
    %c0_i32 = arith.constant 0 : i32
    %c0_i32_0 = arith.constant 0 : i32
    %c0_i32_1 = arith.constant 0 : i32
    return %c0_i32, %c0_i32_0 : i32, i32
  }
  func.func @transform_7(%arg0: i32) -> (i32, i32) {
    %c0_i32 = arith.constant 0 : i32
    %c0_i32_0 = arith.constant 0 : i32
    %c0_i32_1 = arith.constant 0 : i32
    return %c0_i32, %c0_i32_0 : i32, i32
  }
  func.func @transform_8(%arg0: i32) -> (i32, i32) {
    %c0_i32 = arith.constant 0 : i32
    %c0_i32_0 = arith.constant 0 : i32
    %c0_i32_1 = arith.constant 0 : i32
    return %c0_i32, %c0_i32_0 : i32, i32
  }
  func.func @transform_9(%arg0: i32) -> (i32, i32) {
    %c0_i32 = arith.constant 0 : i32
    %c0_i32_0 = arith.constant 0 : i32
    %c0_i32_1 = arith.constant 0 : i32
    return %c0_i32, %c0_i32_0 : i32, i32
  }
  func.func @transform_10(%arg0: i32) -> i32 {
    %c0_i32 = arith.constant 0 : i32
    %c0_i32_0 = arith.constant 0 : i32
    return %c0_i32 : i32
  }
  func.func @transform_11(%arg0: i32) -> (i32, i32) {
    %c0_i32 = arith.constant 0 : i32
    %c0_i32_0 = arith.constant 0 : i32
    return %arg0, %c0_i32 : i32, i32
  }
}

</mosaic_0001>

<llo_original>
// kernel: tpu_custom_call.1
$region0: #{tpu_custom_call.1}
  #allocation0 [shape = 'u32[]', space=smem, size = 0x4, offset = 0x4, fixed_abs, tag = 'smem constant byte address 0x4 - core index']
  #allocation1 [shape = 'u32[72,128]{1,0:T(1,128)}', space=vmem, size = 0x9000, scoped, tag = 'internal scratch']
  %s0 = inlined_call_operand.vmem [shape: f32[8,32], index: 0, kind: input, shape index: {}]
  %s1 = inlined_call_operand.vmem [shape: f32[8,4], index: 1, kind: input, shape index: {}]
  %s2 = inlined_call_operand.vmem [shape: bf16[32,8], index: 2, kind: input, shape index: {}]
  %s3 = inlined_call_operand.hbm [shape: f32[1,8], index: 3, kind: input, shape index: {}]
  %s4 = inlined_call_operand.vmem [shape: bf16[8,8], index: 4, kind: input, shape index: {}]
  %s5 = inlined_call_operand.vmem [shape: f32[1,8], index: 5, kind: input, shape index: {}]
  %s6 = inlined_call_operand.vmem [shape: bf16[4,16], index: 6, kind: input, shape index: {}]
  %s7 = inlined_call_operand.vmem [shape: f32[1,16], index: 7, kind: input, shape index: {}]
  %s8 = inlined_call_operand.vmem [shape: bf16[16,128], index: 8, kind: input, shape index: {}]
  %s9 = inlined_call_operand.vmem [shape: bf16[16,16], index: 9, kind: input, shape index: {}]
  %s10 = inlined_call_operand.vmem [shape: f32[3], index: 10, kind: input, shape index: {}]
  %s11 = inlined_call_operand.hbm [shape: f32[8,128], index: 11, kind: output, shape index: {}]
  %s12 = sld [smem:[#allocation0]]
  $region62: #{tpu_custom_call.1} parent=0
    _
  %s14 = ssub.s32 1, %s12
  %s15 = scalar_select 0, %s14, %s12
  $region1: #{tpu_custom_call.1} parent=0
    #allocation2 [shape = 'u8[512]{0}', space=vmem, size = 0x400, scoped, tag = 'input window, operand 3, single buffered']
    #allocation3 [shape = 's32[1]{0}', space=sflag, size = 0x4, scoped, tag = 'scoped memory for tpu_custom_call.1']
    #allocation4 [shape = 's32[1]{0}', space=sflag, size = 0x4, scoped, tag = 'scoped memory for tpu_custom_call.1']
    #allocation5 [shape = 's32[1]{0}', space=sflag, size = 0x4, scoped, tag = 'scoped memory for tpu_custom_call.1']
    #allocation6 [shape = 'u8[512]{0}', space=smem, size = 0x200, scoped, tag = 'input window, operand 10, single buffered']
    #allocation7 [shape = 'u8[4096]{0}', space=vmem, size = 0x1000, scoped, tag = 'output window, operand 0, single buffered']
    %16 = vsyncpa [#allocation3], 0
    %17 = vsyncpa [#allocation5], 0
    %18 = vsyncpa [#allocation4], 0
    // Predicated region
    $region2: #{tpu_custom_call.1} parent=1 // pred_check
      _
    $region3: #{tpu_custom_call.1} parent=1 // pred_check_branch
      %20 = sbr.rel (0) target = $region5
    $region4: #{tpu_custom_call.1} parent=1 // pred_region
      _
    $region5: #{tpu_custom_call.1} parent=1 // pred_fallthru
      _
    // Predicated region
    $region6: #{tpu_custom_call.1} parent=1 // pred_check
      _
    $region7: #{tpu_custom_call.1} parent=1 // pred_check_branch
      %22 = sbr.rel (0) target = $region9
    $region8: #{tpu_custom_call.1} parent=1 // pred_region
      _
    $region9: #{tpu_custom_call.1} parent=1 // pred_fallthru
      _
    // Predicated region
    $region10: #{tpu_custom_call.1} parent=1 // pred_check
      _
    $region11: #{tpu_custom_call.1} parent=1 // pred_check_branch
      %24 = sbr.rel (0) target = $region13
    $region12: #{tpu_custom_call.1} parent=1 // pred_region
      _
    $region13: #{tpu_custom_call.1} parent=1 // pred_fallthru
      _
    // Predicated region
    $region14: #{tpu_custom_call.1} parent=1 // pred_check
      _
    $region15: #{tpu_custom_call.1} parent=1 // pred_check_branch
      %26 = sbr.rel (0) target = $region17
    $region16: #{tpu_custom_call.1} parent=1 // pred_region
      %28 = vsyncadd [#allocation3], 0
      %s30 = sshll.u32 %s3, 4
      %s31 = int_to_ptr.hbm [resolvable:$true] %s30
      %s32 = sshll.u32 [#allocation2], 4
      %s33 = int_to_ptr.vmem [resolvable:$true] %s32
      %35 = dma.hbm_to_vmem [thread:$0]  %s31, 16, %s33, [#allocation3]
    $region17: #{tpu_custom_call.1} parent=1 // pred_fallthru
      _
    // Predicated region
    $region18: #{tpu_custom_call.1} parent=1 // pred_check
      _
    $region19: #{tpu_custom_call.1} parent=1 // pred_check_branch
      %37 = sbr.rel (0) target = $region21
    $region20: #{tpu_custom_call.1} parent=1 // pred_region
      _
    $region21: #{tpu_custom_call.1} parent=1 // pred_fallthru
      _
    // Predicated region
    $region22: #{tpu_custom_call.1} parent=1 // pred_check
      _
    $region23: #{tpu_custom_call.1} parent=1 // pred_check_branch
      %39 = sbr.rel (0) target = $region25
    $region24: #{tpu_custom_call.1} parent=1 // pred_region
      _
    $region25: #{tpu_custom_call.1} parent=1 // pred_fallthru
      _
    // Predicated region
    $region26: #{tpu_custom_call.1} parent=1 // pred_check
      _
    $region27: #{tpu_custom_call.1} parent=1 // pred_check_branch
      %41 = sbr.rel (0) target = $region29
    $region28: #{tpu_custom_call.1} parent=1 // pred_region
      _
    $region29: #{tpu_custom_call.1} parent=1 // pred_fallthru
      _
    // Predicated region
    $region30: #{tpu_custom_call.1} parent=1 // pred_check
      _
    $region31: #{tpu_custom_call.1} parent=1 // pred_check_branch
      %43 = sbr.rel (0) target = $region33
    $region32: #{tpu_custom_call.1} parent=1 // pred_region
      _
    $region33: #{tpu_custom_call.1} parent=1 // pred_fallthru
      _
    // Predicated region
    $region34: #{tpu_custom_call.1} parent=1 // pred_check
      _
    $region35: #{tpu_custom_call.1} parent=1 // pred_check_branch
      %45 = sbr.rel (0) target = $region37
    $region36: #{tpu_custom_call.1} parent=1 // pred_region
      _
    $region37: #{tpu_custom_call.1} parent=1 // pred_fallthru
      _
    // Predicated region
    $region38: #{tpu_custom_call.1} parent=1 // pred_check
      _
    $region39: #{tpu_custom_call.1} parent=1 // pred_check_branch
      %47 = sbr.rel (0) target = $region41
    $region40: #{tpu_custom_call.1} parent=1 // pred_region
      _
    $region41: #{tpu_custom_call.1} parent=1 // pred_fallthru
      _
    // Predicated region
    $region42: #{tpu_custom_call.1} parent=1 // pred_check
      _
    $region43: #{tpu_custom_call.1} parent=1 // pred_check_branch
      %49 = sbr.rel (0) target = $region45
    $region44: #{tpu_custom_call.1} parent=1 // pred_region
      %51 = vsyncadd [#allocation5], 0
      %s53 = sshll.u32 %s10, 4
      %s54 = int_to_ptr.vmem [resolvable:$true] %s53
      %56 = dma.vmem_to_smem %s54, 16, [#allocation6], [#allocation5]
    $region45: #{tpu_custom_call.1} parent=1 // pred_fallthru
      _
    // Predicated region
    $region46: #{tpu_custom_call.1} parent=1 // pred_check
      _
    $region47: #{tpu_custom_call.1} parent=1 // pred_check_branch
      %58 = sbr.rel (0) target = $region49
    $region48: #{tpu_custom_call.1} parent=1 // pred_region
      %60 = dma.done [#allocation3], 16
    $region49: #{tpu_custom_call.1} parent=1 // pred_fallthru
      _
    // Predicated region
    $region50: #{tpu_custom_call.1} parent=1 // pred_check
      _
    $region51: #{tpu_custom_call.1} parent=1 // pred_check_branch
      %62 = sbr.rel (0) target = $region53
    $region52: #{tpu_custom_call.1} parent=1 // pred_region
      %64 = dma.done [#allocation5], 16
    $region53: #{tpu_custom_call.1} parent=1 // pred_fallthru
      _
    %65 = sfence
    %s67 = sld [smem:[#allocation6]]
    %s68 = sld [smem:[#allocation6 + $0x1]]
    %s69 = sld [smem:[#allocation6 + $0x2]]
    %v70 = vld [vmem:[%s0] sm:$0xff]
    %v71 = vpack.c.bf16 %v70, %v70
    %v72 = vld [vmem:[%s2] sm:$0xf]
    %v73 = vld [vmem:[%s2 + $0x4] sm:$0xf]
    %v74 = vld [vmem:[%s2 + $0x8] sm:$0xf]
    %v75 = vld [vmem:[%s2 + $0xc] sm:$0xf]
    %v76 = vld [vmem:[#allocation2] sm:$0x1]
    %v78 = vperm.slane %v76, 0
    %v84 = vunpack.c.l.b16 %v72
    %v85 = vunpack.c.l.b16 %v73
    %v86 = vunpack.c.l.b16 %v74
    %v87 = vunpack.c.l.b16 %v75
    %v88 = vpack.c.b16 %v85, %v84
    %v89 = vpack.c.b16 %v87, %v86
    %vm92 = vcmask 261120
    %v94 = vsel %vm92, %v71, 0
    %96 = vmatpush.bf16.msra.mxu0 0
    %97 = vmatpush.bf16.msra.mxu0 0
    %98 = vmatpush.bf16.msra.mxu0 0
    %99 = vmatpush.bf16.msra.mxu0 0
    %100 = vmatpush.bf16.msra.mxu0 0
    %101 = vmatpush.bf16.msra.mxu0 0
    %102 = vmatpush.bf16.msra.mxu0 %v89
    %103 = vmatpush.bf16.msra.mxu0 %v88
    %104 = vmatmul.bf16.gmra.mxu0 %v94
    %v105 = vpop.f32.mrf.mxu0
    %v106 = vadd.f32 %v78, %v105
    %v107 = vpop.f32.mrf.mxu0
    %108 = vdwg.mxu0
    %v109 = vmax.f32 %v106, 0.0
    %v110 = vpack.c.bf16 %v109, %v109
    %v111 = vld [vmem:[%s4] sm:$0xf]
    %v112 = vld [vmem:[%s5] sm:$0x1]
    %v114 = vperm.slane %v112, 0
    %vm116 = vcmask 64512
    %v118 = vsel %vm116, %v110, 0
    %vm120 = vcmask 1043456
    %v122 = vsel %vm120, %v111, 0
    %124 = vmatpush.bf16.msra.mxu0 0
    %125 = vmatpush.bf16.msra.mxu0 0
    %126 = vmatpush.bf16.msra.mxu0 0
    %127 = vmatpush.bf16.msra.mxu0 0
    %128 = vmatpush.bf16.msra.mxu0 0
    %129 = vmatpush.bf16.msra.mxu0 0
    %130 = vmatpush.bf16.msra.mxu0 0
    %131 = vmatpush.bf16.msra.mxu0 %v122
    %132 = vmatmul.bf16.gmra.mxu0 %v118
    %v133 = vpop.f32.mrf.mxu0
    %v134 = vadd.f32 %v114, %v133
    %v135 = vpop.f32.mrf.mxu0
    %136 = vdwg.mxu0
    %v137 = vmax.f32 %v134, 0.0
    %v138 = vand.u32 2147483647, %v134
    %v139 = vsub.f32 0.0, %v138
    %v140 = vmul.f32 %v139, 1.442695
    %v141 = vpow.pop %v140
    %v142 = vadd.f32 %v141, 1.0
    %v143 = vlog2.pop %v142
    %v144 = vmul.f32 %v143, 0.6931472
    %v145 = vmul.f32 -0.5, %v141
    %v146 = vadd.f32 %v145, 1.0
    %v147 = vmul.f32 %v146, %v141
    %v148 = vand.u32 2147483647, %v141
    %vm149 = vcmp.lt.f32.partialorder %v148, 0.0004427343
    %v150 = vsel %vm149, %v147, %v144
    %v151 = vadd.f32 %v137, %v150
    %v152 = vadd.f32 %v151, 0.001
    %v153 = vld [vmem:[%s1] sm:$0xff]
    %155 = vrot.lane.b32.xlu0 %v153, 4
    %v156 = vpop.permute.xlu0 %155
    %v158 = vmul.f32 %v152, %v156
    %160 = vrot.lane.b32.xlu0 %v158, 124
    %v161 = vpop.permute.xlu0 %160
    %v163 = vadd.f32 %v134, %v161
    %v164 = vmul.f32 %v163, %v163
    %vm165 = vcmask 31744
    %v166 = vsel %vm165, %v164, 0.0
    %167 = vadd.xlane.f32.xlu0 %v166
    %v168 = vpop.xlane.xlu0 %167
    %v169 = vpack.c.bf16 %v163, %v163
    %v170 = vld [vmem:[%s6] sm:$0x3]
    %v172 = vsel %vm165, %v169, 0
    %vm174 = vcmask 1041408
    %v176 = vsel %vm174, %v170, 0
    %178 = vmatpush.bf16.msra.mxu0 0
    %179 = vmatpush.bf16.msra.mxu0 0
    %180 = vmatpush.bf16.msra.mxu0 0
    %181 = vmatpush.bf16.msra.mxu0 0
    %182 = vmatpush.bf16.msra.mxu0 0
    %183 = vmatpush.bf16.msra.mxu0 0
    %184 = vmatpush.bf16.msra.mxu0 0
    %185 = vmatpush.bf16.msra.mxu0 %v176
    %186 = vmatmul.bf16.gmra.mxu0 %v172
    %v187 = vpop.f32.mrf.mxu0
    %v188 = vadd.f32 0.0, %v187
    %v189 = vpop.f32.mrf.mxu0
    %190 = vdwg.mxu0
    %v191 = vstv %s67
    %v192 = vmul.f32 %v191, %v168
    %v193 = vld [vmem:[%s7] sm:$0x1]
    %v195 = vperm.slane %v193, 0
    %v197 = vadd.f32 %v192, %v195
    %v198 = vadd.f32 %v197, %v188
    %v199 = vmin.f32 %v198, 0.0
    %v200 = vmul.f32 %v199, 1.442695
    %v201 = vpow.pop %v200
    %v202 = vpack.c.bf16 %v201, %v201
    %v203 = vld [vmem:[%s8] sm:$0xf]
    %v204 = vld [vmem:[%s8 + $0x4] sm:$0xf]
    %v207 = vunpack.c.l.b16 %v203
    %v208 = vunpack.c.l.b16 %v204
    %v209 = vpack.c.b16 %v208, %v207
    %vm211 = vcmask 130048
    %v213 = vsel %vm211, %v202, 0
    %215 = vmatpush.bf16.msra.mxu0 0
    %216 = vmatpush.bf16.msra.mxu0 0
    %217 = vmatpush.bf16.msra.mxu0 0
    %218 = vmatpush.bf16.msra.mxu0 0
    %219 = vmatpush.bf16.msra.mxu0 0
    %220 = vmatpush.bf16.msra.mxu0 0
    %221 = vmatpush.bf16.msra.mxu0 0
    %222 = vmatpush.bf16.msra.mxu0 %v209
    %223 = vmatmul.bf16.gmra.mxu0 %v213
    %v224 = vpop.f32.mrf.mxu0
    %v225 = vadd.f32 0.0, %v224
    %v226 = vpop.f32.mrf.mxu0
    %227 = vdwg.mxu0
    %v228 = vld [vmem:[%s9] sm:$0xf]
    %v229 = vld [vmem:[%s9 + $0x4] sm:$0xf]
    %v232 = vunpack.c.l.b16 %v228
    %v233 = vunpack.c.l.b16 %v229
    %v234 = vpack.c.b16 %v233, %v232
    %236 = vmatpush.bf16.msra.mxu0 0
    %237 = vmatpush.bf16.msra.mxu0 0
    %238 = vmatpush.bf16.msra.mxu0 0
    %239 = vmatpush.bf16.msra.mxu0 0
    %240 = vmatpush.bf16.msra.mxu0 0
    %241 = vmatpush.bf16.msra.mxu0 0
    %242 = vmatpush.bf16.msra.mxu0 0
    %243 = vmatpush.bf16.msra.mxu0 %v234
    %244 = vmatmul.bf16.gmra.mxu0 %v213
    %v245 = vpop.f32.mrf.mxu0
    %v246 = vadd.f32 0.0, %v245
    %v247 = vpop.f32.mrf.mxu0
    %248 = vdwg.mxu0
    %v249 = vmul.f32 %v246, %v201
    %v250 = vsel %vm211, %v249, 0.0
    %251 = vadd.xlane.f32.xlu0 %v250
    %v252 = vpop.xlane.xlu0 %251
    %v253 = vstv %s68
    %v254 = vsub.f32 %v253, %v252
    %v255 = vmax.f32 %v254, 0.0
    %v256 = vstv %s69
    %v257 = vadd.f32 %v255, %v256
    %v258 = vlaneseq
    %v259 = vand.u32 %v258, 127
    %vm260 = vcmp.eq.s32.totalorder %v259, 32
    %v261 = vsel %vm260, 1, 0
    %vm262 = vcmp.eq.s32.totalorder %v261, 1
    %v263 = vsel %vm262, %v257, %v225
    %264 = vst [vmem:[#allocation7] sm:$0xff] %v263
    // Predicated region
    $region54: #{tpu_custom_call.1} parent=1 // pred_check
      _
    $region55: #{tpu_custom_call.1} parent=1 // pred_check_branch
      %266 = sbr.rel (0) target = $region57
    $region56: #{tpu_custom_call.1} parent=1 // pred_region
      %268 = vsyncadd [#allocation4], 0
      %s270 = sshll.u32 [#allocation7], 4
      %s271 = int_to_ptr.vmem [resolvable:$true] %s270
      %s272 = sshll.u32 %s11, 4
      %s273 = int_to_ptr.hbm [resolvable:$true] %s272
      %275 = dma.vmem_to_hbm [thread:$0]  %s271, 128, %s273, [#allocation4]
    $region57: #{tpu_custom_call.1} parent=1 // pred_fallthru
      _
    // Predicated region
    $region58: #{tpu_custom_call.1} parent=1 // pred_check
      _
    $region59: #{tpu_custom_call.1} parent=1 // pred_check_branch
      %277 = sbr.rel (0) target = $region61
    $region60: #{tpu_custom_call.1} parent=1 // pred_region
      %279 = dma.done [#allocation4], 128
    $region61: #{tpu_custom_call.1} parent=1 // pred_fallthru
      _
    %280 = vsyncpa [#allocation3], 1
    %281 = vsyncpa [#allocation4], 1
    %282 = vsyncpa [#allocation5], 1

</llo_original>
